<compile_context>
chip_gen: v5e
topology: v5e:2x2
jax: 0.10.0
libtpu: 0.0.40
codegen_flags: <defaults>
</compile_context>

<pallas_src>
import functools

import jax
import jax.numpy as jnp
from jax.experimental import pallas as pl
from jax.experimental.pallas import tpu as pltpu


def _mlp_kernel(x_ref, w1_ref, w2_ref, b2_ref, w3_ref, b3_ref, o_ref):
    ew = w3_ref.dtype  # elementwise dtype (bf16 on v6e/v7x, f32 on v5e)

    # ---- Layer 1: [64, K_pad] @ [K_pad, tm] on the MXU (b1 folded in via the
    # ones-row of x and the extra w1 column) + LeakyReLU(0.2). ---------------
    h1 = jnp.dot(w1_ref[...], x_ref[...], preferred_element_type=jnp.float32)
    h1 = h1.astype(ew)
    h1 = jnp.maximum(h1, 0.2 * h1)                                  # [64, tm]

    # ---- Layer 2: [128, 64] @ [64, tm] on the MXU, bf16 operands by default,
    # f32 accumulation, + bias + LeakyReLU(0.2). ------------------------------
    h2 = jnp.dot(w2_ref[...], h1.astype(w2_ref.dtype),
                 preferred_element_type=jnp.float32)                # [128, tm]
    h2 = (h2 + b2_ref[...]).astype(ew)
    h2 = jnp.maximum(h2, 0.2 * h2)

    # ---- Layer 3: Linear(128 -> 1).  Output width 1 would waste an MXU pass;
    # VPU multiply + sublane (XLU) reduce in f32 keeps the result a lane-dense
    # [1, tm] row. -------------------------------------------------------------
    prod = (h2 * w3_ref[...]).astype(jnp.float32)
    out = jnp.sum(prod, axis=0, keepdims=True) + b3_ref[...]
    o_ref[...] = out.astype(o_ref.dtype)


def _device_kind():
    try:
        return jax.devices()[0].device_kind.lower()
    except Exception:
        return ""


def _default_elementwise_dtype(kind):
    # bf16 VALU path only on v6e / v7x; everything else stays f32 elementwise.
    if ("v6" in kind) or ("v7" in kind) or ("7x" in kind):
        return jnp.bfloat16
    return jnp.float32


def _has_two_tensorcores(kind):
    return any(t in kind for t in ("v7", "7x", "v4", "v5p"))


def _choose_tiling(M, tm_req, two_tc):
    """Lane tile (multiple of 128) and padded M.

    Single-TC chips: one big tile (serial grid -> minimize per-step overhead).
    Two-TC chips: an even number of grid steps so the parallel axis splits
    evenly across TensorCores.
    """
    tm_req = max(128, (tm_req // 128) * 128)
    m_up = pl.cdiv(M, 128) * 128
    if (not two_tc) or m_up <= 128:
        tm = min(tm_req, m_up)
        return tm, pl.cdiv(m_up, tm) * tm
    steps = max(2, pl.cdiv(m_up, tm_req))
    steps += steps % 2
    tm = max(128, pl.cdiv(pl.cdiv(m_up, steps), 128) * 128)
    steps = pl.cdiv(m_up, tm)
    steps += steps % 2
    return tm, steps * tm


def tree_gan_discriminator(x, params, *, tm=4096, compute_dtype=jnp.bfloat16,
                           elementwise_dtype=None):
    """x: [B, N, F] float32.  params: dict (w1,b1,w2,b2,w3,b3).  Returns [B, N] f32.

    compute_dtype:     MXU matmul operand dtype (bf16 default, f32 accumulate).
    elementwise_dtype: LeakyReLU / layer-3 multiply dtype; None = auto
                       (bf16 on v6e/v7x, f32 elsewhere).
    """
    B, N, F = x.shape
    M = B * N

    kind = _device_kind()
    if elementwise_dtype is None:
        elementwise_dtype = _default_elementwise_dtype(kind)
    tm, M_pad = _choose_tiling(M, tm, _has_two_tensorcores(kind))
    # NOTE: if tm is pushed past ~8192 (v5e especially), also set
    # pltpu.CompilerParams(vmem_limit_bytes=...); at the default tm=4096 the
    # per-step footprint (~5-6 MB) fits every generation's default scoped VMEM.

    # K rows: F coordinate rows + 1 ones-row (folds b1 into w1), zero-pad to 8.
    K = F + 1
    K_pad = max(8, pl.cdiv(K, 8) * 8)

    # [B, N, F] -> lane-dense [K_pad, M_pad] slab; transpose + ones-row + pad
    # fuse into one XLA pass under jit.
    # TODO(synk): produce x in [F, M] layout upstream to remove this relayout pass.
    coords = x.reshape(M, F).T.astype(compute_dtype)
    ones = jnp.ones((1, M), compute_dtype)
    xt = jnp.concatenate([coords, ones], axis=0)
    xt = jnp.pad(xt, ((0, K_pad - K), (0, M_pad - M)))

    w1, b1 = params["w1"], params["b1"]          # (64, F),   (64, 1)
    w2, b2 = params["w2"], params["b2"]          # (128, 64), (128, 1)
    w3, b3 = params["w3"], params["b3"]          # (128, 1),  (1, 1)

    w1a = jnp.pad(jnp.concatenate([w1, b1], axis=1),
                  ((0, 0), (0, K_pad - K))).astype(compute_dtype)   # (64, K_pad)
    w2c = w2.astype(compute_dtype)
    b2c = b2.astype(jnp.float32)
    w3e = w3.astype(elementwise_dtype)
    b3c = b3.astype(jnp.float32)

    grid = (M_pad // tm,)
    full = lambda a: pl.BlockSpec(a.shape, lambda i: (0, 0))  # VMEM-resident across grid

    out = pl.pallas_call(
        _mlp_kernel,
        out_shape=jax.ShapeDtypeStruct((1, M_pad), jnp.float32),
        grid_spec=pltpu.PrefetchScalarGridSpec(
            num_scalar_prefetch=0,
            grid=grid,
            in_specs=[
                pl.BlockSpec((K_pad, tm), lambda i: (0, i)),   # x tile, lane-dense
                full(w1a), full(w2c), full(b2c), full(w3e), full(b3c),
            ],
            out_specs=pl.BlockSpec((1, tm), lambda i: (0, i)),  # lane-dense row store
        ),
        compiler_params=pltpu.CompilerParams(
            dimension_semantics=("parallel",),
        ),
    )(xt, w1a, w2c, b2c, w3e, b3c)

    # Matches torch .squeeze() for B, N > 1 (for B==1 or N==1 torch also drops
    # that axis; callers needing that can squeeze the result themselves).
    return out[0, :M].reshape(B, N)


def init_params(features, key):
    """Deterministic init mimicking nn.Linear (uniform +-1/sqrt(fan_in)).

    Weights are stored as [out, in] (torch layout); w3 is kept as a [128, 1]
    column so the kernel's layer-3 reduce needs no transpose.
    """
    keys = jax.random.split(key, 6)

    def linear(kw, kb, fan_in, fan_out):
        bound = 1.0 / jnp.sqrt(float(fan_in))
        w = jax.random.uniform(kw, (fan_out, fan_in), jnp.float32, -bound, bound)
        b = jax.random.uniform(kb, (fan_out, 1), jnp.float32, -bound, bound)
        return w, b

    w1, b1 = linear(keys[0], keys[1], features, 64)
    w2, b2 = linear(keys[2], keys[3], 64, 128)
    w3t, b3 = linear(keys[4], keys[5], 128, 1)        # w3t: (1, 128), b3: (1, 1)
    return {"w1": w1, "b1": b1, "w2": w2, "b2": b2, "w3": w3t.T, "b3": b3}


def _reference(x, p):
    """Plain-JAX reference of the same forward pass (for a sanity check)."""
    def lrelu(v):
        return jnp.where(v > 0, v, 0.2 * v)
    h = lrelu(x @ p["w1"].T + p["b1"][:, 0])
    h = lrelu(h @ p["w2"].T + p["b2"][:, 0])
    o = h @ p["w3"] + p["b3"][0, 0]
    return jnp.squeeze(o, axis=-1)


if __name__ == "__main__":
    key = jax.random.PRNGKey(0)
    k_x, k_p = jax.random.split(key)

    # Small point cloud: 2 clouds, 200 points, 3D coords (M = 400 lanes).
    B, N, F = 2, 200, 3
    x = jax.random.normal(k_x, (B, N, F), dtype=jnp.float32)
    params = init_params(F, k_p)

    ref = _reference(x, params)

    # Default path: bf16 MXU operands (+ auto bf16/f32 elementwise), f32 accum.
    fwd = jax.jit(functools.partial(tree_gan_discriminator, params=params))
    out = jax.block_until_ready(fwd(x))
    assert out.shape == (B, N), out.shape
    assert jnp.allclose(out, ref, atol=1e-1, rtol=1e-1), "bf16 default path mismatch"

    # Full-f32 path: tight-tolerance check against the plain-JAX reference.
    fwd_f32 = jax.jit(functools.partial(
        tree_gan_discriminator, params=params,
        compute_dtype=jnp.float32, elementwise_dtype=jnp.float32))
    out_f32 = jax.block_until_ready(fwd_f32(x))
    assert jnp.allclose(out_f32, ref, atol=1e-4, rtol=1e-4), "f32 path mismatch"

    print("KERNEL_OK")
</pallas_src>

<mosaic_0001>
module attributes {stable_mosaic.version = 11 : i64} {
  func.func @_mlp_kernel(%arg0: i32, %arg1: memref<8x512xbf16, #tpu.memory_space<vmem>>, %arg2: memref<64x8xbf16, #tpu.memory_space<vmem>>, %arg3: memref<128x64xbf16, #tpu.memory_space<vmem>>, %arg4: memref<128x1xf32, #tpu.memory_space<vmem>>, %arg5: memref<128x1xf32, #tpu.memory_space<vmem>>, %arg6: memref<1x1xf32, #tpu.memory_space<vmem>>, %arg7: memref<1x512xf32, #tpu.memory_space<vmem>>) attributes {dimension_semantics = [#tpu.dimension_semantics<parallel>], iteration_bounds = array<i64: 1>, scalar_prefetch = 0 : i64, scratch_operands = 0 : i64, tpu.core_type = #tpu.core_type<tc>, window_params = [{transform_indices = @transform_0, window_bounds = array<i64: 8, 512>}, {pipeline_mode = #tpu.pipeline_mode<synchronous>, transform_indices = @transform_1, window_bounds = array<i64: 64, 8>}, {pipeline_mode = #tpu.pipeline_mode<synchronous>, transform_indices = @transform_2, window_bounds = array<i64: 128, 64>}, {pipeline_mode = #tpu.pipeline_mode<synchronous>, transform_indices = @transform_3, window_bounds = array<i64: 128, 1>}, {pipeline_mode = #tpu.pipeline_mode<synchronous>, transform_indices = @transform_4, window_bounds = array<i64: 128, 1>}, {pipeline_mode = #tpu.pipeline_mode<synchronous>, transform_indices = @transform_5, window_bounds = array<i64: 1, 1>}, {transform_indices = @transform_6, window_bounds = array<i64: 1, 512>}]} {
    %c0 = arith.constant 0 : index
    %c0_0 = arith.constant 0 : index
    %0 = vector.load %arg2[%c0, %c0_0] : memref<64x8xbf16, #tpu.memory_space<vmem>>, vector<64x8xbf16>
    %c0_1 = arith.constant 0 : index
    %c0_2 = arith.constant 0 : index
    %1 = vector.load %arg1[%c0_1, %c0_2] : memref<8x512xbf16, #tpu.memory_space<vmem>>, vector<8x512xbf16>
    %cst = arith.constant dense<0.000000e+00> : vector<64x512xf32>
    %2 = tpu.matmul %0, %1, %cst {dimension_numbers = #tpu.dot_dimension_numbers<[1], [0], [0], [1], [0, 0, 1, 1], [], []>} : vector<64x8xbf16>, vector<8x512xbf16>, vector<64x512xf32> -> vector<64x512xf32>
    %cst_3 = arith.constant 2.000000e-01 : f32
    %3 = vector.broadcast %cst_3 : f32 to vector<64x512xf32>
    %4 = arith.mulf %3, %2 : vector<64x512xf32>
    %5 = arith.maximumf %2, %4 : vector<64x512xf32>
    %c0_4 = arith.constant 0 : index
    %c0_5 = arith.constant 0 : index
    %6 = vector.load %arg3[%c0_4, %c0_5] : memref<128x64xbf16, #tpu.memory_space<vmem>>, vector<128x64xbf16>
    %7 = arith.truncf %5 : vector<64x512xf32> to vector<64x512xbf16>
    %cst_6 = arith.constant dense<0.000000e+00> : vector<128x512xf32>
    %8 = tpu.matmul %6, %7, %cst_6 {dimension_numbers = #tpu.dot_dimension_numbers<[1], [0], [0], [1], [0, 0, 1, 1], [], []>} : vector<128x64xbf16>, vector<64x512xbf16>, vector<128x512xf32> -> vector<128x512xf32>
    %c0_7 = arith.constant 0 : index
    %c0_8 = arith.constant 0 : index
    %9 = vector.load %arg4[%c0_7, %c0_8] : memref<128x1xf32, #tpu.memory_space<vmem>>, vector<128x1xf32>
    %10 = vector.broadcast %9 : vector<128x1xf32> to vector<128x512xf32>
    %11 = arith.addf %8, %10 : vector<128x512xf32>
    %cst_9 = arith.constant 2.000000e-01 : f32
    %12 = vector.broadcast %cst_9 : f32 to vector<128x512xf32>
    %13 = arith.mulf %12, %11 : vector<128x512xf32>
    %14 = arith.maximumf %11, %13 : vector<128x512xf32>
    %c0_10 = arith.constant 0 : index
    %c0_11 = arith.constant 0 : index
    %15 = vector.load %arg5[%c0_10, %c0_11] : memref<128x1xf32, #tpu.memory_space<vmem>>, vector<128x1xf32>
    %16 = vector.broadcast %15 : vector<128x1xf32> to vector<128x512xf32>
    %17 = arith.mulf %14, %16 : vector<128x512xf32>
    %cst_12 = arith.constant dense<0.000000e+00> : vector<512xf32>
    %18 = vector.multi_reduction <add>, %17, %cst_12 [0] : vector<128x512xf32> to vector<512xf32>
    %19 = vector.shape_cast %18 : vector<512xf32> to vector<1x512xf32>
    %c0_13 = arith.constant 0 : index
    %c0_14 = arith.constant 0 : index
    %20 = vector.load %arg6[%c0_13, %c0_14] : memref<1x1xf32, #tpu.memory_space<vmem>>, vector<1x1xf32>
    %21 = vector.broadcast %20 : vector<1x1xf32> to vector<1x512xf32>
    %22 = arith.addf %19, %21 : vector<1x512xf32>
    %c0_15 = arith.constant 0 : index
    %c0_16 = arith.constant 0 : index
    %23 = vector.load %arg7[%c0_15, %c0_16] : memref<1x512xf32, #tpu.memory_space<vmem>>, vector<1x512xf32>
    tpu.vector_store %arg7[%c0_15, %c0_16], %22 {strides = array<i32>} : memref<1x512xf32, #tpu.memory_space<vmem>>, vector<1x512xf32>,
    return
  }
  func.func @transform_0(%arg0: i32) -> (i32, i32) {
    %c0_i32 = arith.constant 0 : i32
    %c0_i32_0 = arith.constant 0 : i32
    return %c0_i32, %arg0 : i32, i32
  }
  func.func @transform_1(%arg0: i32) -> (i32, i32) {
    %c0_i32 = arith.constant 0 : i32
    %c0_i32_0 = arith.constant 0 : i32
    %c0_i32_1 = arith.constant 0 : i32
    return %c0_i32, %c0_i32_0 : i32, i32
  }
  func.func @transform_2(%arg0: i32) -> (i32, i32) {
    %c0_i32 = arith.constant 0 : i32
    %c0_i32_0 = arith.constant 0 : i32
    %c0_i32_1 = arith.constant 0 : i32
    return %c0_i32, %c0_i32_0 : i32, i32
  }
  func.func @transform_3(%arg0: i32) -> (i32, i32) {
    %c0_i32 = arith.constant 0 : i32
    %c0_i32_0 = arith.constant 0 : i32
    %c0_i32_1 = arith.constant 0 : i32
    return %c0_i32, %c0_i32_0 : i32, i32
  }
  func.func @transform_4(%arg0: i32) -> (i32, i32) {
    %c0_i32 = arith.constant 0 : i32
    %c0_i32_0 = arith.constant 0 : i32
    %c0_i32_1 = arith.constant 0 : i32
    return %c0_i32, %c0_i32_0 : i32, i32
  }
  func.func @transform_5(%arg0: i32) -> (i32, i32) {
    %c0_i32 = arith.constant 0 : i32
    %c0_i32_0 = arith.constant 0 : i32
    %c0_i32_1 = arith.constant 0 : i32
    return %c0_i32, %c0_i32_0 : i32, i32
  }
  func.func @transform_6(%arg0: i32) -> (i32, i32) {
    %c0_i32 = arith.constant 0 : i32
    %c0_i32_0 = arith.constant 0 : i32
    return %c0_i32, %arg0 : i32, i32
  }
}

</mosaic_0001>

<llo_original>
// kernel: squeeze.1
$region0: #{squeeze.1}
  %s0 = inlined_call_operand.vmem [shape: f32[400], index: 0, kind: input, shape index: {}]
  %s1 = inlined_call_operand.hbm [shape: f32[2,200], index: 1, kind: output, shape index: {}]
  $region1: #{squeeze.1} parent=0
    #allocation0 [shape = 'u8[2048]{0}', space=vmem, size = 0x800, scoped, tag = 'operand span for operand 1']
    #allocation1 [shape = 's32[1]{0}', space=sflag, size = 0x4, scoped, tag = 'scoped memory for squeeze.1']
    #allocation2 [shape = 'u8[8192]{0}', space=vmem, size = 0x2000, scoped, tag = 'scoped mem for output reshape']
    #allocation3 [shape = 'u8[4096]{0}', space=vmem, size = 0x1000, scoped, tag = 'scoped mem for input reshape']
    %2 = vsyncpa [#allocation1], 0
    %s4 = ssub.s32 16, 1
    %v5 = vld [vmem:[%s0] sm:%s4]
    %6 = vst [vmem:[#allocation3] sm:%s4] %v5
    %s7 = scalar_lea.vmem [#allocation3], 1
    %v8 = vld [vmem:[%s7] sm:$0x1]
    %vm9 = vcmask 588800
    %s10 = scalar_lea.vmem [#allocation2], 8
    %11 = vst.msk [vmem:[%s10] sm:$0x1] %vm9, %v8
    %v12 = vld [vmem:[#allocation3] sm:$0x1]
    %13 = vst [vmem:[#allocation2] sm:$0x1] %v12
    %s14 = scalar_lea.vmem [#allocation3], 1
    %v15 = vld [vmem:[%s14] sm:$0x3]
    %s16 = scalar_lea.vmem [#allocation3], 3
    %v17 = vld [vmem:[%s16] sm:$0x1]
    %vm18 = vcmask 588800
    %v19 = vsel %vm18, %v17, %v15
    %20 = vrot.lane.b32.xlu0 %v19, 56
    %v21 = vpop.permute.xlu0 %20
    %vm22 = vcmask 457728
    %s23 = scalar_lea.vmem [#allocation2], 1
    %24 = vst.msk [vmem:[%s23] ss:$8 sm:$0x3] %vm22, %v21
    %vm25 = vcmask 589248
    %s26 = scalar_lea.vmem [#allocation2], 9
    %27 = vst.msk [vmem:[%s26] sm:$0x1] %vm25, %v21
    %s28 = scalar_lea.vmem [#allocation3], 2
    %v29 = vld [vmem:[%s28] sm:$0x1]
    %30 = vrot.lane.b32.xlu0 %v29, 56
    %v31 = vpop.permute.xlu0 %30
    %vm32 = vcmask 1048000
    %s33 = scalar_lea.vmem [#allocation2], 1
    %34 = vst.msk [vmem:[%s33] sm:$0x1] %vm32, %v31
    %s36 = ssub.s32 4, 1
    %v37 = vld [vmem:[#allocation2] sm:%s36]
    %s39 = ssub.s32 4, 1
    %40 = vst [vmem:[#allocation0] sm:%s39] %v37
    %s41 = scalar_lea.vmem [#allocation2], 8
    %v42 = vld [vmem:[%s41] sm:%s36]
    %s44 = ssub.s32 4, 1
    %s45 = scalar_lea.vmem [#allocation0], 2
    %46 = vst [vmem:[%s45] sm:%s44] %v42
    %48 = vsyncadd [#allocation1], 0
    %s50 = sshll.u32 [#allocation0], 4
    %s51 = int_to_ptr.vmem [resolvable:$true] %s50
    %s52 = sshll.u32 %s1, 4
    %s53 = int_to_ptr.hbm [resolvable:$true] %s52
    %55 = dma.vmem_to_hbm [thread:$0]  %s51, 64, %s53, [#allocation1]
    %57 = dma.done [#allocation1], 64
    %58 = vsyncpa [#allocation1], 1

// kernel: tree_gan_discriminator.1
$region0: #{tree_gan_discriminator.1}
  #allocation0 [shape = 'u32[]', space=smem, size = 0x4, offset = 0x4, fixed_abs, tag = 'smem constant byte address 0x4 - core index']
  #allocation1 [shape = 'u32[72,128]{1,0:T(1,128)}', space=vmem, size = 0x9000, scoped, tag = 'internal scratch']
  #allocation2 [shape = 'f32[1,1]{1,0:T(1,128)S(1)}', space=vmem, size = 0x200, scoped, tag = 'scoped memory for tree_gan_discriminator.1']
  %s0 = inlined_call_operand.vmem [shape: bf16[8,512], index: 0, kind: input, shape index: {}]
  %s1 = inlined_call_operand.vmem [shape: bf16[64,8], index: 1, kind: input, shape index: {}]
  %s2 = inlined_call_operand.hbm [shape: bf16[128,64], index: 2, kind: input, shape index: {}]
  %s3 = inlined_call_operand.hbm [shape: f32[128,1], index: 3, kind: input, shape index: {}]
  %s4 = inlined_call_operand.hbm [shape: f32[128,1], index: 4, kind: input, shape index: {}]
  %s5 = inlined_call_operand.<no memory space> [shape: f32[1,1], index: 5, kind: input, shape index: {}]
  %s6 = inlined_call_operand.vmem [shape: f32[1,512], index: 6, kind: output, shape index: {}]
  %s7 = sld [smem:[#allocation0]]
  $region46: #{tree_gan_discriminator.1} parent=0
    _
  %s9 = ssub.s32 1, %s7
  %s10 = scalar_select 0, %s9, %s7
  %v11 = vstv %s5
  %12 = vst [vmem:[#allocation2] sm:$0x1] %v11
  $region1: #{tree_gan_discriminator.1} parent=0
    #allocation3 [shape = 'u8[32768]{0}', space=vmem, size = 0x8000, scoped, tag = 'input window, operand 2, single buffered']
    #allocation4 [shape = 's32[1]{0}', space=sflag, size = 0x4, scoped, tag = 'scoped memory for tree_gan_discriminator.1']
    #allocation5 [shape = 'u8[65536]{0}', space=vmem, size = 0x10000, scoped, tag = 'input window, operand 3, single buffered']
    #allocation6 [shape = 's32[1]{0}', space=sflag, size = 0x4, scoped, tag = 'scoped memory for tree_gan_discriminator.1']
    #allocation7 [shape = 'u8[65536]{0}', space=vmem, size = 0x10000, scoped, tag = 'input window, operand 4, single buffered']
    %13 = vsyncpa [#allocation4], 0
    %14 = vsyncpa [#allocation6], 0
    // Predicated region
    $region2: #{tree_gan_discriminator.1} parent=1 // pred_check
      _
    $region3: #{tree_gan_discriminator.1} parent=1 // pred_check_branch
      %16 = sbr.rel (0) target = $region5
    $region4: #{tree_gan_discriminator.1} parent=1 // pred_region
      _
    $region5: #{tree_gan_discriminator.1} parent=1 // pred_fallthru
      _
    // Predicated region
    $region6: #{tree_gan_discriminator.1} parent=1 // pred_check
      _
    $region7: #{tree_gan_discriminator.1} parent=1 // pred_check_branch
      %18 = sbr.rel (0) target = $region9
    $region8: #{tree_gan_discriminator.1} parent=1 // pred_region
      _
    $region9: #{tree_gan_discriminator.1} parent=1 // pred_fallthru
      _
    // Predicated region
    $region10: #{tree_gan_discriminator.1} parent=1 // pred_check
      _
    $region11: #{tree_gan_discriminator.1} parent=1 // pred_check_branch
      %20 = sbr.rel (0) target = $region13
    $region12: #{tree_gan_discriminator.1} parent=1 // pred_region
      %22 = vsyncadd [#allocation4], 0
      %s23 = sshll.u32 %s2, 4
      %s24 = int_to_ptr.hbm [resolvable:$true] %s23
      %s25 = sshll.u32 [#allocation3], 4
      %s26 = int_to_ptr.vmem [resolvable:$true] %s25
      %31 = dma.hbm_to_vmem [thread:$0]  %s24, 1024, %s26, [#allocation4], 64, 64, 4
    $region13: #{tree_gan_discriminator.1} parent=1 // pred_fallthru
      _
    // Predicated region
    $region14: #{tree_gan_discriminator.1} parent=1 // pred_check
      _
    $region15: #{tree_gan_discriminator.1} parent=1 // pred_check_branch
      %33 = sbr.rel (0) target = $region17
    $region16: #{tree_gan_discriminator.1} parent=1 // pred_region
      %35 = vsyncadd [#allocation6], 0
      %s36 = sshll.u32 %s3, 4
      %s37 = int_to_ptr.hbm [resolvable:$true] %s36
      %s38 = sshll.u32 [#allocation5], 4
      %s39 = int_to_ptr.vmem [resolvable:$true] %s38
      %44 = dma.hbm_to_vmem [thread:$0]  %s37, 2048, %s39, [#allocation6], 128, 128, 8
    $region17: #{tree_gan_discriminator.1} parent=1 // pred_fallthru
      _
    // Predicated region
    $region18: #{tree_gan_discriminator.1} parent=1 // pred_check
      _
    $region19: #{tree_gan_discriminator.1} parent=1 // pred_check_branch
      %46 = sbr.rel (0) target = $region21
    $region20: #{tree_gan_discriminator.1} parent=1 // pred_region
      %48 = vsyncadd [#allocation6], 0
      %s49 = sshll.u32 %s4, 4
      %s50 = int_to_ptr.hbm [resolvable:$true] %s49
      %s51 = sshll.u32 [#allocation7], 4
      %s52 = int_to_ptr.vmem [resolvable:$true] %s51
      %57 = dma.hbm_to_vmem [thread:$0]  %s50, 2048, %s52, [#allocation6], 128, 128, 8
    $region21: #{tree_gan_discriminator.1} parent=1 // pred_fallthru
      _
    // Predicated region
    $region22: #{tree_gan_discriminator.1} parent=1 // pred_check
      _
    $region23: #{tree_gan_discriminator.1} parent=1 // pred_check_branch
      %59 = sbr.rel (0) target = $region25
    $region24: #{tree_gan_discriminator.1} parent=1 // pred_region
      _
    $region25: #{tree_gan_discriminator.1} parent=1 // pred_fallthru
      _
    // Predicated region
    $region26: #{tree_gan_discriminator.1} parent=1 // pred_check
      _
    $region27: #{tree_gan_discriminator.1} parent=1 // pred_check_branch
      %61 = sbr.rel (0) target = $region29
    $region28: #{tree_gan_discriminator.1} parent=1 // pred_region
      %63 = dma.done [#allocation4], 1024
    $region29: #{tree_gan_discriminator.1} parent=1 // pred_fallthru
      _
    // Predicated region
    $region30: #{tree_gan_discriminator.1} parent=1 // pred_check
      _
    $region31: #{tree_gan_discriminator.1} parent=1 // pred_check_branch
      %65 = sbr.rel (0) target = $region33
    $region32: #{tree_gan_discriminator.1} parent=1 // pred_region
      %67 = dma.done [#allocation6], 2048
    $region33: #{tree_gan_discriminator.1} parent=1 // pred_fallthru
      _
    // Predicated region
    $region34: #{tree_gan_discriminator.1} parent=1 // pred_check
      _
    $region35: #{tree_gan_discriminator.1} parent=1 // pred_check_branch
      %69 = sbr.rel (0) target = $region37
    $region36: #{tree_gan_discriminator.1} parent=1 // pred_region
      %71 = dma.done [#allocation6], 2048
    $region37: #{tree_gan_discriminator.1} parent=1 // pred_fallthru
      _
    %v73 = vld [vmem:[%s1] sm:$0xf]
    %v74 = vld [vmem:[%s1 + $0x4] sm:$0xf]
    %v75 = vld [vmem:[%s1 + $0x8] sm:$0xf]
    %v76 = vld [vmem:[%s1 + $0xc] sm:$0xf]
    %v77 = vld [vmem:[%s1 + $0x10] sm:$0xf]
    %v78 = vld [vmem:[%s1 + $0x14] sm:$0xf]
    %v79 = vld [vmem:[%s1 + $0x18] sm:$0xf]
    %v80 = vld [vmem:[%s1 + $0x1c] sm:$0xf]
    %v81 = vld [vmem:[%s0] sm:$0xff]
    %v82 = vld [vmem:[%s0 + $0x8] sm:$0xff]
    %v91 = vunpack.c.l.b16 %v73
    %v92 = vunpack.c.l.b16 %v74
    %v93 = vunpack.c.l.b16 %v75
    %v94 = vunpack.c.l.b16 %v76
    %v95 = vunpack.c.l.b16 %v77
    %v96 = vunpack.c.l.b16 %v78
    %v97 = vunpack.c.l.b16 %v79
    %v98 = vunpack.c.l.b16 %v80
    %v99 = vpack.c.b16 %v92, %v91
    %v100 = vpack.c.b16 %v94, %v93
    %v101 = vpack.c.b16 %v96, %v95
    %v102 = vpack.c.b16 %v98, %v97
    %v105 = vunpack.c.l.b16 %v81
    %v106 = vunpack.c.h.b16 %v81
    %v107 = vunpack.c.l.b16 %v82
    %v108 = vunpack.c.h.b16 %v82
    %v109 = vpack.c.b16 %v105, %v105
    %v110 = vpack.c.b16 %v106, %v106
    %v111 = vpack.c.b16 %v107, %v107
    %v112 = vpack.c.b16 %v108, %v108
    %vm113 = vcmask 64512
    %v115 = vsel %vm113, %v99, 0
    %v118 = vsel %vm113, %v100, 0
    %v121 = vsel %vm113, %v101, 0
    %v124 = vsel %vm113, %v102, 0
    %vm126 = vcmask 1043456
    %v128 = vsel %vm126, %v109, 0
    %v131 = vsel %vm126, %v110, 0
    %v134 = vsel %vm126, %v111, 0
    %v137 = vsel %vm126, %v112, 0
    %139 = vmatpush.bf16.msra.mxu0 0
    %140 = vmatpush.bf16.msra.mxu0 0
    %141 = vmatpush.bf16.msra.mxu0 0
    %142 = vmatpush.bf16.msra.mxu0 0
    %143 = vmatpush.bf16.msra.mxu0 0
    %144 = vmatpush.bf16.msra.mxu0 0
    %145 = vmatpush.bf16.msra.mxu0 0
    %146 = vmatpush.bf16.msra.mxu0 %v128
    %147 = vmatmul.bf16.gmra.mxu0 %v115
    %v148 = vpop.f32.mrf.mxu0
    %v149 = vadd.f32 0.0, %v148
    %v150 = vpop.f32.mrf.mxu0
    %v151 = vadd.f32 0.0, %v150
    %152 = vmatmul.bf16.gmra.mxu0 %v118
    %v153 = vpop.f32.mrf.mxu0
    %v154 = vadd.f32 0.0, %v153
    %v155 = vpop.f32.mrf.mxu0
    %v156 = vadd.f32 0.0, %v155
    %157 = vmatmul.bf16.gmra.mxu0 %v121
    %v158 = vpop.f32.mrf.mxu0
    %v159 = vadd.f32 0.0, %v158
    %v160 = vpop.f32.mrf.mxu0
    %v161 = vadd.f32 0.0, %v160
    %162 = vmatmul.bf16.gmra.mxu0 %v124
    %v163 = vpop.f32.mrf.mxu0
    %v164 = vadd.f32 0.0, %v163
    %v165 = vpop.f32.mrf.mxu0
    %v166 = vadd.f32 0.0, %v165
    %167 = vdwg.mxu0
    %168 = vmatpush.bf16.msra.mxu0 0
    %169 = vmatpush.bf16.msra.mxu0 0
    %170 = vmatpush.bf16.msra.mxu0 0
    %171 = vmatpush.bf16.msra.mxu0 0
    %172 = vmatpush.bf16.msra.mxu0 0
    %173 = vmatpush.bf16.msra.mxu0 0
    %174 = vmatpush.bf16.msra.mxu0 0
    %175 = vmatpush.bf16.msra.mxu0 %v131
    %176 = vmatmul.bf16.gmra.mxu0 %v115
    %v177 = vpop.f32.mrf.mxu0
    %v178 = vadd.f32 0.0, %v177
    %v179 = vpop.f32.mrf.mxu0
    %v180 = vadd.f32 0.0, %v179
    %181 = vmatmul.bf16.gmra.mxu0 %v118
    %v182 = vpop.f32.mrf.mxu0
    %v183 = vadd.f32 0.0, %v182
    %v184 = vpop.f32.mrf.mxu0
    %v185 = vadd.f32 0.0, %v184
    %186 = vmatmul.bf16.gmra.mxu0 %v121
    %v187 = vpop.f32.mrf.mxu0
    %v188 = vadd.f32 0.0, %v187
    %v189 = vpop.f32.mrf.mxu0
    %v190 = vadd.f32 0.0, %v189
    %191 = vmatmul.bf16.gmra.mxu0 %v124
    %v192 = vpop.f32.mrf.mxu0
    %v193 = vadd.f32 0.0, %v192
    %v194 = vpop.f32.mrf.mxu0
    %v195 = vadd.f32 0.0, %v194
    %196 = vdwg.mxu0
    %197 = vmatpush.bf16.msra.mxu0 0
    %198 = vmatpush.bf16.msra.mxu0 0
    %199 = vmatpush.bf16.msra.mxu0 0
    %200 = vmatpush.bf16.msra.mxu0 0
    %201 = vmatpush.bf16.msra.mxu0 0
    %202 = vmatpush.bf16.msra.mxu0 0
    %203 = vmatpush.bf16.msra.mxu0 0
    %204 = vmatpush.bf16.msra.mxu0 %v134
    %205 = vmatmul.bf16.gmra.mxu0 %v115
    %v206 = vpop.f32.mrf.mxu0
    %v207 = vadd.f32 0.0, %v206
    %v208 = vpop.f32.mrf.mxu0
    %v209 = vadd.f32 0.0, %v208
    %210 = vmatmul.bf16.gmra.mxu0 %v118
    %v211 = vpop.f32.mrf.mxu0
    %v212 = vadd.f32 0.0, %v211
    %v213 = vpop.f32.mrf.mxu0
    %v214 = vadd.f32 0.0, %v213
    %215 = vmatmul.bf16.gmra.mxu0 %v121
    %v216 = vpop.f32.mrf.mxu0
    %v217 = vadd.f32 0.0, %v216
    %v218 = vpop.f32.mrf.mxu0
    %v219 = vadd.f32 0.0, %v218
    %220 = vmatmul.bf16.gmra.mxu0 %v124
    %v221 = vpop.f32.mrf.mxu0
    %v222 = vadd.f32 0.0, %v221
    %v223 = vpop.f32.mrf.mxu0
    %v224 = vadd.f32 0.0, %v223
    %225 = vdwg.mxu0
    %226 = vmatpush.bf16.msra.mxu0 0
    %227 = vmatpush.bf16.msra.mxu0 0
    %228 = vmatpush.bf16.msra.mxu0 0
    %229 = vmatpush.bf16.msra.mxu0 0
    %230 = vmatpush.bf16.msra.mxu0 0
    %231 = vmatpush.bf16.msra.mxu0 0
    %232 = vmatpush.bf16.msra.mxu0 0
    %233 = vmatpush.bf16.msra.mxu0 %v137
    %234 = vmatmul.bf16.gmra.mxu0 %v115
    %v235 = vpop.f32.mrf.mxu0
    %v236 = vadd.f32 0.0, %v235
    %v237 = vpop.f32.mrf.mxu0
    %v238 = vadd.f32 0.0, %v237
    %239 = vmatmul.bf16.gmra.mxu0 %v118
    %v240 = vpop.f32.mrf.mxu0
    %v241 = vadd.f32 0.0, %v240
    %v242 = vpop.f32.mrf.mxu0
    %v243 = vadd.f32 0.0, %v242
    %244 = vmatmul.bf16.gmra.mxu0 %v121
    %v245 = vpop.f32.mrf.mxu0
    %v246 = vadd.f32 0.0, %v245
    %v247 = vpop.f32.mrf.mxu0
    %v248 = vadd.f32 0.0, %v247
    %249 = vmatmul.bf16.gmra.mxu0 %v124
    %v250 = vpop.f32.mrf.mxu0
    %v251 = vadd.f32 0.0, %v250
    %v252 = vpop.f32.mrf.mxu0
    %v253 = vadd.f32 0.0, %v252
    %254 = vdwg.mxu0
    %v255 = vmul.f32 %v149, 0.2
    %v256 = vmul.f32 %v178, 0.2
    %v257 = vmul.f32 %v207, 0.2
    %v258 = vmul.f32 %v236, 0.2
    %v259 = vmul.f32 %v151, 0.2
    %v260 = vmul.f32 %v180, 0.2
    %v261 = vmul.f32 %v209, 0.2
    %v262 = vmul.f32 %v238, 0.2
    %v263 = vmul.f32 %v154, 0.2
    %v264 = vmul.f32 %v183, 0.2
    %v265 = vmul.f32 %v212, 0.2
    %v266 = vmul.f32 %v241, 0.2
    %v267 = vmul.f32 %v156, 0.2
    %v268 = vmul.f32 %v185, 0.2
    %v269 = vmul.f32 %v214, 0.2
    %v270 = vmul.f32 %v243, 0.2
    %v271 = vmul.f32 %v159, 0.2
    %v272 = vmul.f32 %v188, 0.2
    %v273 = vmul.f32 %v217, 0.2
    %v274 = vmul.f32 %v246, 0.2
    %v275 = vmul.f32 %v161, 0.2
    %v276 = vmul.f32 %v190, 0.2
    %v277 = vmul.f32 %v219, 0.2
    %v278 = vmul.f32 %v248, 0.2
    %v279 = vmul.f32 %v164, 0.2
    %v280 = vmul.f32 %v193, 0.2
    %v281 = vmul.f32 %v222, 0.2
    %v282 = vmul.f32 %v251, 0.2
    %v283 = vmul.f32 %v166, 0.2
    %v284 = vmul.f32 %v195, 0.2
    %v285 = vmul.f32 %v224, 0.2
    %v286 = vmul.f32 %v253, 0.2
    %v287 = vmax.f32 %v149, %v255
    %v288 = vmax.f32 %v178, %v256
    %v289 = vmax.f32 %v207, %v257
    %v290 = vmax.f32 %v236, %v258
    %v291 = vmax.f32 %v151, %v259
    %v292 = vmax.f32 %v180, %v260
    %v293 = vmax.f32 %v209, %v261
    %v294 = vmax.f32 %v238, %v262
    %v295 = vmax.f32 %v154, %v263
    %v296 = vmax.f32 %v183, %v264
    %v297 = vmax.f32 %v212, %v265
    %v298 = vmax.f32 %v241, %v266
    %v299 = vmax.f32 %v156, %v267
    %v300 = vmax.f32 %v185, %v268
    %v301 = vmax.f32 %v214, %v269
    %v302 = vmax.f32 %v243, %v270
    %v303 = vmax.f32 %v159, %v271
    %v304 = vmax.f32 %v188, %v272
    %v305 = vmax.f32 %v217, %v273
    %v306 = vmax.f32 %v246, %v274
    %v307 = vmax.f32 %v161, %v275
    %v308 = vmax.f32 %v190, %v276
    %v309 = vmax.f32 %v219, %v277
    %v310 = vmax.f32 %v248, %v278
    %v311 = vmax.f32 %v164, %v279
    %v312 = vmax.f32 %v193, %v280
    %v313 = vmax.f32 %v222, %v281
    %v314 = vmax.f32 %v251, %v282
    %v315 = vmax.f32 %v166, %v283
    %v316 = vmax.f32 %v195, %v284
    %v317 = vmax.f32 %v224, %v285
    %v318 = vmax.f32 %v253, %v286
    %v319 = vld [vmem:[#allocation3] sm:$0xf]
    %v320 = vld [vmem:[#allocation3 + $0x4] sm:$0xf]
    %v321 = vld [vmem:[#allocation3 + $0x8] sm:$0xf]
    %v322 = vld [vmem:[#allocation3 + $0xc] sm:$0xf]
    %v323 = vld [vmem:[#allocation3 + $0x10] sm:$0xf]
    %v324 = vld [vmem:[#allocation3 + $0x14] sm:$0xf]
    %v325 = vld [vmem:[#allocation3 + $0x18] sm:$0xf]
    %v326 = vld [vmem:[#allocation3 + $0x1c] sm:$0xf]
    %v327 = vld [vmem:[#allocation3 + $0x20] sm:$0xf]
    %v328 = vld [vmem:[#allocation3 + $0x24] sm:$0xf]
    %v329 = vld [vmem:[#allocation3 + $0x28] sm:$0xf]
    %v330 = vld [vmem:[#allocation3 + $0x2c] sm:$0xf]
    %v331 = vld [vmem:[#allocation3 + $0x30] sm:$0xf]
    %v332 = vld [vmem:[#allocation3 + $0x34] sm:$0xf]
    %v333 = vld [vmem:[#allocation3 + $0x38] sm:$0xf]
    %v334 = vld [vmem:[#allocation3 + $0x3c] sm:$0xf]
    %v335 = vpack.c.bf16 %v291, %v287
    %v336 = vpack.c.bf16 %v292, %v288
    %v337 = vpack.c.bf16 %v293, %v289
    %v338 = vpack.c.bf16 %v294, %v290
    %v339 = vpack.c.bf16 %v299, %v295
    %v340 = vpack.c.bf16 %v300, %v296
    %v341 = vpack.c.bf16 %v301, %v297
    %v342 = vpack.c.bf16 %v302, %v298
    %v343 = vpack.c.bf16 %v307, %v303
    %v344 = vpack.c.bf16 %v308, %v304
    %v345 = vpack.c.bf16 %v309, %v305
    %v346 = vpack.c.bf16 %v310, %v306
    %v347 = vpack.c.bf16 %v315, %v311
    %v348 = vpack.c.bf16 %v316, %v312
    %v349 = vpack.c.bf16 %v317, %v313
    %v350 = vpack.c.bf16 %v318, %v314
    %v351 = vld [vmem:[#allocation5] sm:$0xff]
    %v352 = vld [vmem:[#allocation5 + $0x8] sm:$0xff]
    %v353 = vld [vmem:[#allocation5 + $0x10] sm:$0xff]
    %v354 = vld [vmem:[#allocation5 + $0x18] sm:$0xff]
    %v355 = vld [vmem:[#allocation5 + $0x20] sm:$0xff]
    %v356 = vld [vmem:[#allocation5 + $0x28] sm:$0xff]
    %v357 = vld [vmem:[#allocation5 + $0x30] sm:$0xff]
    %v358 = vld [vmem:[#allocation5 + $0x38] sm:$0xff]
    %v359 = vld [vmem:[#allocation5 + $0x40] sm:$0xff]
    %v360 = vld [vmem:[#allocation5 + $0x48] sm:$0xff]
    %v361 = vld [vmem:[#allocation5 + $0x50] sm:$0xff]
    %v362 = vld [vmem:[#allocation5 + $0x58] sm:$0xff]
    %v363 = vld [vmem:[#allocation5 + $0x60] sm:$0xff]
    %v364 = vld [vmem:[#allocation5 + $0x68] sm:$0xff]
    %v365 = vld [vmem:[#allocation5 + $0x70] sm:$0xff]
    %v366 = vld [vmem:[#allocation5 + $0x78] sm:$0xff]
    %368 = vset.pattern.permute.xlu0 0
    %369 = vperm.xlu0 %368, %v351
    %v370 = vpop.permute.xlu0 %369
    %373 = vset.pattern.permute.xlu0 0
    %374 = vperm.xlu0 %373, %v352
    %v375 = vpop.permute.xlu0 %374
    %378 = vset.pattern.permute.xlu0 0
    %379 = vperm.xlu0 %378, %v353
    %v380 = vpop.permute.xlu0 %379
    %383 = vset.pattern.permute.xlu0 0
    %384 = vperm.xlu0 %383, %v354
    %v385 = vpop.permute.xlu0 %384
    %388 = vset.pattern.permute.xlu0 0
    %389 = vperm.xlu0 %388, %v355
    %v390 = vpop.permute.xlu0 %389
    %393 = vset.pattern.permute.xlu0 0
    %394 = vperm.xlu0 %393, %v356
    %v395 = vpop.permute.xlu0 %394
    %398 = vset.pattern.permute.xlu0 0
    %399 = vperm.xlu0 %398, %v357
    %v400 = vpop.permute.xlu0 %399
    %403 = vset.pattern.permute.xlu0 0
    %404 = vperm.xlu0 %403, %v358
    %v405 = vpop.permute.xlu0 %404
    %408 = vset.pattern.permute.xlu0 0
    %409 = vperm.xlu0 %408, %v359
    %v410 = vpop.permute.xlu0 %409
    %413 = vset.pattern.permute.xlu0 0
    %414 = vperm.xlu0 %413, %v360
    %v415 = vpop.permute.xlu0 %414
    %418 = vset.pattern.permute.xlu0 0
    %419 = vperm.xlu0 %418, %v361
    %v420 = vpop.permute.xlu0 %419
    %423 = vset.pattern.permute.xlu0 0
    %424 = vperm.xlu0 %423, %v362
    %v425 = vpop.permute.xlu0 %424
    %428 = vset.pattern.permute.xlu0 0
    %429 = vperm.xlu0 %428, %v363
    %v430 = vpop.permute.xlu0 %429
    %433 = vset.pattern.permute.xlu0 0
    %434 = vperm.xlu0 %433, %v364
    %v435 = vpop.permute.xlu0 %434
    %438 = vset.pattern.permute.xlu0 0
    %439 = vperm.xlu0 %438, %v365
    %v440 = vpop.permute.xlu0 %439
    %443 = vset.pattern.permute.xlu0 0
    %444 = vperm.xlu0 %443, %v366
    %v445 = vpop.permute.xlu0 %444
    %v463 = vunpack.c.l.b16 %v319
    %v464 = vunpack.c.l.b16 %v320
    %v465 = vunpack.c.l.b16 %v321
    %v466 = vunpack.c.l.b16 %v322
    %v467 = vunpack.c.l.b16 %v323
    %v468 = vunpack.c.l.b16 %v324
    %v469 = vunpack.c.l.b16 %v325
    %v470 = vunpack.c.l.b16 %v326
    %v471 = vunpack.c.l.b16 %v327
    %v472 = vunpack.c.l.b16 %v328
    %v473 = vunpack.c.l.b16 %v329
    %v474 = vunpack.c.l.b16 %v330
    %v475 = vunpack.c.l.b16 %v331
    %v476 = vunpack.c.l.b16 %v332
    %v477 = vunpack.c.l.b16 %v333
    %v478 = vunpack.c.l.b16 %v334
    %v479 = vpack.c.b16 %v464, %v463
    %v480 = vpack.c.b16 %v466, %v465
    %v481 = vpack.c.b16 %v468, %v467
    %v482 = vpack.c.b16 %v470, %v469
    %v483 = vpack.c.b16 %v472, %v471
    %v484 = vpack.c.b16 %v474, %v473
    %v485 = vpack.c.b16 %v476, %v475
    %v486 = vpack.c.b16 %v478, %v477
    %vm487 = vcmask 523264
    %v489 = vsel %vm487, %v479, 0
    %v492 = vsel %vm487, %v480, 0
    %v495 = vsel %vm487, %v481, 0
    %v498 = vsel %vm487, %v482, 0
    %v501 = vsel %vm487, %v483, 0
    %v504 = vsel %vm487, %v484, 0
    %v507 = vsel %vm487, %v485, 0
    %v510 = vsel %vm487, %v486, 0
    %512 = vmatpush.bf16.msra.mxu0 0
    %513 = vmatpush.bf16.msra.mxu0 0
    %514 = vmatpush.bf16.msra.mxu0 0
    %515 = vmatpush.bf16.msra.mxu0 0
    %516 = vmatpush.bf16.msra.mxu0 %v347
    %517 = vmatpush.bf16.msra.mxu0 %v343
    %518 = vmatpush.bf16.msra.mxu0 %v339
    %519 = vmatpush.bf16.msra.mxu0 %v335
    %520 = vmatmul.bf16.gmra.mxu0 %v489
    %v521 = vpop.f32.mrf.mxu0
    %v522 = vadd.f32 %v370, %v521
    %v523 = vpop.f32.mrf.mxu0
    %v524 = vadd.f32 %v375, %v523
    %525 = vmatmul.bf16.gmra.mxu0 %v492
    %v526 = vpop.f32.mrf.mxu0
    %v527 = vadd.f32 %v380, %v526
    %v528 = vpop.f32.mrf.mxu0
    %v529 = vadd.f32 %v385, %v528
    %530 = vmatmul.bf16.gmra.mxu0 %v495
    %v531 = vpop.f32.mrf.mxu0
    %v532 = vadd.f32 %v390, %v531
    %v533 = vpop.f32.mrf.mxu0
    %v534 = vadd.f32 %v395, %v533
    %535 = vmatmul.bf16.gmra.mxu0 %v498
    %v536 = vpop.f32.mrf.mxu0
    %v537 = vadd.f32 %v400, %v536
    %v538 = vpop.f32.mrf.mxu0
    %v539 = vadd.f32 %v405, %v538
    %540 = vmatmul.bf16.gmra.mxu0 %v501
    %v541 = vpop.f32.mrf.mxu0
    %v542 = vadd.f32 %v410, %v541
    %v543 = vpop.f32.mrf.mxu0
    %v544 = vadd.f32 %v415, %v543
    %545 = vmatmul.bf16.gmra.mxu0 %v504
    %v546 = vpop.f32.mrf.mxu0
    %v547 = vadd.f32 %v420, %v546
    %v548 = vpop.f32.mrf.mxu0
    %v549 = vadd.f32 %v425, %v548
    %550 = vmatmul.bf16.gmra.mxu0 %v507
    %v551 = vpop.f32.mrf.mxu0
    %v552 = vadd.f32 %v430, %v551
    %v553 = vpop.f32.mrf.mxu0
    %v554 = vadd.f32 %v435, %v553
    %555 = vmatmul.bf16.gmra.mxu0 %v510
    %v556 = vpop.f32.mrf.mxu0
    %v557 = vadd.f32 %v440, %v556
    %v558 = vpop.f32.mrf.mxu0
    %v559 = vadd.f32 %v445, %v558
    %560 = vdwg.mxu0
    %561 = vmatpush.bf16.msra.mxu0 0
    %562 = vmatpush.bf16.msra.mxu0 0
    %563 = vmatpush.bf16.msra.mxu0 0
    %564 = vmatpush.bf16.msra.mxu0 0
    %565 = vmatpush.bf16.msra.mxu0 %v348
    %566 = vmatpush.bf16.msra.mxu0 %v344
    %567 = vmatpush.bf16.msra.mxu0 %v340
    %568 = vmatpush.bf16.msra.mxu0 %v336
    %569 = vmatmul.bf16.gmra.mxu0 %v489
    %v570 = vpop.f32.mrf.mxu0
    %v571 = vadd.f32 %v370, %v570
    %v572 = vpop.f32.mrf.mxu0
    %v573 = vadd.f32 %v375, %v572
    %574 = vmatmul.bf16.gmra.mxu0 %v492
    %v575 = vpop.f32.mrf.mxu0
    %v576 = vadd.f32 %v380, %v575
    %v577 = vpop.f32.mrf.mxu0
    %v578 = vadd.f32 %v385, %v577
    %579 = vmatmul.bf16.gmra.mxu0 %v495
    %v580 = vpop.f32.mrf.mxu0
    %v581 = vadd.f32 %v390, %v580
    %v582 = vpop.f32.mrf.mxu0
    %v583 = vadd.f32 %v395, %v582
    %584 = vmatmul.bf16.gmra.mxu0 %v498
    %v585 = vpop.f32.mrf.mxu0
    %v586 = vadd.f32 %v400, %v585
    %v587 = vpop.f32.mrf.mxu0
    %v588 = vadd.f32 %v405, %v587
    %589 = vmatmul.bf16.gmra.mxu0 %v501
    %v590 = vpop.f32.mrf.mxu0
    %v591 = vadd.f32 %v410, %v590
    %v592 = vpop.f32.mrf.mxu0
    %v593 = vadd.f32 %v415, %v592
    %594 = vmatmul.bf16.gmra.mxu0 %v504
    %v595 = vpop.f32.mrf.mxu0
    %v596 = vadd.f32 %v420, %v595
    %v597 = vpop.f32.mrf.mxu0
    %v598 = vadd.f32 %v425, %v597
    %599 = vmatmul.bf16.gmra.mxu0 %v507
    %v600 = vpop.f32.mrf.mxu0
    %v601 = vadd.f32 %v430, %v600
    %v602 = vpop.f32.mrf.mxu0
    %v603 = vadd.f32 %v435, %v602
    %604 = vmatmul.bf16.gmra.mxu0 %v510
    %v605 = vpop.f32.mrf.mxu0
    %v606 = vadd.f32 %v440, %v605
    %v607 = vpop.f32.mrf.mxu0
    %v608 = vadd.f32 %v445, %v607
    %609 = vdwg.mxu0
    %610 = vmatpush.bf16.msra.mxu0 0
    %611 = vmatpush.bf16.msra.mxu0 0
    %612 = vmatpush.bf16.msra.mxu0 0
    %613 = vmatpush.bf16.msra.mxu0 0
    %614 = vmatpush.bf16.msra.mxu0 %v349
    %615 = vmatpush.bf16.msra.mxu0 %v345
    %616 = vmatpush.bf16.msra.mxu0 %v341
    %617 = vmatpush.bf16.msra.mxu0 %v337
    %618 = vmatmul.bf16.gmra.mxu0 %v489
    %v619 = vpop.f32.mrf.mxu0
    %v620 = vadd.f32 %v370, %v619
    %v621 = vpop.f32.mrf.mxu0
    %v622 = vadd.f32 %v375, %v621
    %623 = vmatmul.bf16.gmra.mxu0 %v492
    %v624 = vpop.f32.mrf.mxu0
    %v625 = vadd.f32 %v380, %v624
    %v626 = vpop.f32.mrf.mxu0
    %v627 = vadd.f32 %v385, %v626
    %628 = vmatmul.bf16.gmra.mxu0 %v495
    %v629 = vpop.f32.mrf.mxu0
    %v630 = vadd.f32 %v390, %v629
    %v631 = vpop.f32.mrf.mxu0
    %v632 = vadd.f32 %v395, %v631
    %633 = vmatmul.bf16.gmra.mxu0 %v498
    %v634 = vpop.f32.mrf.mxu0
    %v635 = vadd.f32 %v400, %v634
    %v636 = vpop.f32.mrf.mxu0
    %v637 = vadd.f32 %v405, %v636
    %638 = vmatmul.bf16.gmra.mxu0 %v501
    %v639 = vpop.f32.mrf.mxu0
    %v640 = vadd.f32 %v410, %v639
    %v641 = vpop.f32.mrf.mxu0
    %v642 = vadd.f32 %v415, %v641
    %643 = vmatmul.bf16.gmra.mxu0 %v504
    %v644 = vpop.f32.mrf.mxu0
    %v645 = vadd.f32 %v420, %v644
    %v646 = vpop.f32.mrf.mxu0
    %v647 = vadd.f32 %v425, %v646
    %648 = vmatmul.bf16.gmra.mxu0 %v507
    %v649 = vpop.f32.mrf.mxu0
    %v650 = vadd.f32 %v430, %v649
    %v651 = vpop.f32.mrf.mxu0
    %v652 = vadd.f32 %v435, %v651
    %653 = vmatmul.bf16.gmra.mxu0 %v510
    %v654 = vpop.f32.mrf.mxu0
    %v655 = vadd.f32 %v440, %v654
    %v656 = vpop.f32.mrf.mxu0
    %v657 = vadd.f32 %v445, %v656
    %658 = vdwg.mxu0
    %659 = vmatpush.bf16.msra.mxu0 0
    %660 = vmatpush.bf16.msra.mxu0 0
    %661 = vmatpush.bf16.msra.mxu0 0
    %662 = vmatpush.bf16.msra.mxu0 0
    %663 = vmatpush.bf16.msra.mxu0 %v350
    %664 = vmatpush.bf16.msra.mxu0 %v346
    %665 = vmatpush.bf16.msra.mxu0 %v342
    %666 = vmatpush.bf16.msra.mxu0 %v338
    %667 = vmatmul.bf16.gmra.mxu0 %v489
    %v668 = vpop.f32.mrf.mxu0
    %v669 = vadd.f32 %v370, %v668
    %v670 = vpop.f32.mrf.mxu0
    %v671 = vadd.f32 %v375, %v670
    %672 = vmatmul.bf16.gmra.mxu0 %v492
    %v673 = vpop.f32.mrf.mxu0
    %v674 = vadd.f32 %v380, %v673
    %v675 = vpop.f32.mrf.mxu0
    %v676 = vadd.f32 %v385, %v675
    %677 = vmatmul.bf16.gmra.mxu0 %v495
    %v678 = vpop.f32.mrf.mxu0
    %v679 = vadd.f32 %v390, %v678
    %v680 = vpop.f32.mrf.mxu0
    %v681 = vadd.f32 %v395, %v680
    %682 = vmatmul.bf16.gmra.mxu0 %v498
    %v683 = vpop.f32.mrf.mxu0
    %v684 = vadd.f32 %v400, %v683
    %v685 = vpop.f32.mrf.mxu0
    %v686 = vadd.f32 %v405, %v685
    %687 = vmatmul.bf16.gmra.mxu0 %v501
    %v688 = vpop.f32.mrf.mxu0
    %v689 = vadd.f32 %v410, %v688
    %v690 = vpop.f32.mrf.mxu0
    %v691 = vadd.f32 %v415, %v690
    %692 = vmatmul.bf16.gmra.mxu0 %v504
    %v693 = vpop.f32.mrf.mxu0
    %v694 = vadd.f32 %v420, %v693
    %v695 = vpop.f32.mrf.mxu0
    %v696 = vadd.f32 %v425, %v695
    %697 = vmatmul.bf16.gmra.mxu0 %v507
    %v698 = vpop.f32.mrf.mxu0
    %v699 = vadd.f32 %v430, %v698
    %v700 = vpop.f32.mrf.mxu0
    %v701 = vadd.f32 %v435, %v700
    %702 = vmatmul.bf16.gmra.mxu0 %v510
    %v703 = vpop.f32.mrf.mxu0
    %v704 = vadd.f32 %v440, %v703
    %v705 = vpop.f32.mrf.mxu0
    %v706 = vadd.f32 %v445, %v705
    %707 = vdwg.mxu0
    %v708 = vmul.f32 %v522, 0.2
    %v709 = vmul.f32 %v571, 0.2
    %v710 = vmul.f32 %v620, 0.2
    %v711 = vmul.f32 %v669, 0.2
    %v712 = vmul.f32 %v524, 0.2
    %v713 = vmul.f32 %v573, 0.2
    %v714 = vmul.f32 %v622, 0.2
    %v715 = vmul.f32 %v671, 0.2
    %v716 = vmul.f32 %v527, 0.2
    %v717 = vmul.f32 %v576, 0.2
    %v718 = vmul.f32 %v625, 0.2
    %v719 = vmul.f32 %v674, 0.2
    %v720 = vmul.f32 %v529, 0.2
    %v721 = vmul.f32 %v578, 0.2
    %v722 = vmul.f32 %v627, 0.2
    %v723 = vmul.f32 %v676, 0.2
    %v724 = vmul.f32 %v532, 0.2
    %v725 = vmul.f32 %v581, 0.2
    %v726 = vmul.f32 %v630, 0.2
    %v727 = vmul.f32 %v679, 0.2
    %v728 = vmul.f32 %v534, 0.2
    %v729 = vmul.f32 %v583, 0.2
    %v730 = vmul.f32 %v632, 0.2
    %v731 = vmul.f32 %v681, 0.2
    %v732 = vmul.f32 %v537, 0.2
    %v733 = vmul.f32 %v586, 0.2
    %v734 = vmul.f32 %v635, 0.2
    %v735 = vmul.f32 %v684, 0.2
    %v736 = vmul.f32 %v539, 0.2
    %v737 = vmul.f32 %v588, 0.2
    %v738 = vmul.f32 %v637, 0.2
    %v739 = vmul.f32 %v686, 0.2
    %v740 = vmul.f32 %v542, 0.2
    %v741 = vmul.f32 %v591, 0.2
    %v742 = vmul.f32 %v640, 0.2
    %v743 = vmul.f32 %v689, 0.2
    %v744 = vmul.f32 %v544, 0.2
    %v745 = vmul.f32 %v593, 0.2
    %v746 = vmul.f32 %v642, 0.2
    %v747 = vmul.f32 %v691, 0.2
    %v748 = vmul.f32 %v547, 0.2
    %v749 = vmul.f32 %v596, 0.2
    %v750 = vmul.f32 %v645, 0.2
    %v751 = vmul.f32 %v694, 0.2
    %v752 = vmul.f32 %v549, 0.2
    %v753 = vmul.f32 %v598, 0.2
    %v754 = vmul.f32 %v647, 0.2
    %v755 = vmul.f32 %v696, 0.2
    %v756 = vmul.f32 %v552, 0.2
    %v757 = vmul.f32 %v601, 0.2
    %v758 = vmul.f32 %v650, 0.2
    %v759 = vmul.f32 %v699, 0.2
    %v760 = vmul.f32 %v554, 0.2
    %v761 = vmul.f32 %v603, 0.2
    %v762 = vmul.f32 %v652, 0.2
    %v763 = vmul.f32 %v701, 0.2
    %v764 = vmul.f32 %v557, 0.2
    %v765 = vmul.f32 %v606, 0.2
    %v766 = vmul.f32 %v655, 0.2
    %v767 = vmul.f32 %v704, 0.2
    %v768 = vmul.f32 %v559, 0.2
    %v769 = vmul.f32 %v608, 0.2
    %v770 = vmul.f32 %v657, 0.2
    %v771 = vmul.f32 %v706, 0.2
    %v772 = vmax.f32 %v522, %v708
    %v773 = vmax.f32 %v571, %v709
    %v774 = vmax.f32 %v620, %v710
    %v775 = vmax.f32 %v669, %v711
    %v776 = vmax.f32 %v524, %v712
    %v777 = vmax.f32 %v573, %v713
    %v778 = vmax.f32 %v622, %v714
    %v779 = vmax.f32 %v671, %v715
    %v780 = vmax.f32 %v527, %v716
    %v781 = vmax.f32 %v576, %v717
    %v782 = vmax.f32 %v625, %v718
    %v783 = vmax.f32 %v674, %v719
    %v784 = vmax.f32 %v529, %v720
    %v785 = vmax.f32 %v578, %v721
    %v786 = vmax.f32 %v627, %v722
    %v787 = vmax.f32 %v676, %v723
    %v788 = vmax.f32 %v532, %v724
    %v789 = vmax.f32 %v581, %v725
    %v790 = vmax.f32 %v630, %v726
    %v791 = vmax.f32 %v679, %v727
    %v792 = vmax.f32 %v534, %v728
    %v793 = vmax.f32 %v583, %v729
    %v794 = vmax.f32 %v632, %v730
    %v795 = vmax.f32 %v681, %v731
    %v796 = vmax.f32 %v537, %v732
    %v797 = vmax.f32 %v586, %v733
    %v798 = vmax.f32 %v635, %v734
    %v799 = vmax.f32 %v684, %v735
    %v800 = vmax.f32 %v539, %v736
    %v801 = vmax.f32 %v588, %v737
    %v802 = vmax.f32 %v637, %v738
    %v803 = vmax.f32 %v686, %v739
    %v804 = vmax.f32 %v542, %v740
    %v805 = vmax.f32 %v591, %v741
    %v806 = vmax.f32 %v640, %v742
    %v807 = vmax.f32 %v689, %v743
    %v808 = vmax.f32 %v544, %v744
    %v809 = vmax.f32 %v593, %v745
    %v810 = vmax.f32 %v642, %v746
    %v811 = vmax.f32 %v691, %v747
    %v812 = vmax.f32 %v547, %v748
    %v813 = vmax.f32 %v596, %v749
    %v814 = vmax.f32 %v645, %v750
    %v815 = vmax.f32 %v694, %v751
    %v816 = vmax.f32 %v549, %v752
    %v817 = vmax.f32 %v598, %v753
    %v818 = vmax.f32 %v647, %v754
    %v819 = vmax.f32 %v696, %v755
    %v820 = vmax.f32 %v552, %v756
    %v821 = vmax.f32 %v601, %v757
    %v822 = vmax.f32 %v650, %v758
    %v823 = vmax.f32 %v699, %v759
    %v824 = vmax.f32 %v554, %v760
    %v825 = vmax.f32 %v603, %v761
    %v826 = vmax.f32 %v652, %v762
    %v827 = vmax.f32 %v701, %v763
    %v828 = vmax.f32 %v557, %v764
    %v829 = vmax.f32 %v606, %v765
    %v830 = vmax.f32 %v655, %v766
    %v831 = vmax.f32 %v704, %v767
    %v832 = vmax.f32 %v559, %v768
    %v833 = vmax.f32 %v608, %v769
    %v834 = vmax.f32 %v657, %v770
    %v835 = vmax.f32 %v706, %v771
    %v836 = vld [vmem:[#allocation7] sm:$0xff]
    %v837 = vld [vmem:[#allocation7 + $0x8] sm:$0xff]
    %v838 = vld [vmem:[#allocation7 + $0x10] sm:$0xff]
    %v839 = vld [vmem:[#allocation7 + $0x18] sm:$0xff]
    %v840 = vld [vmem:[#allocation7 + $0x20] sm:$0xff]
    %v841 = vld [vmem:[#allocation7 + $0x28] sm:$0xff]
    %v842 = vld [vmem:[#allocation7 + $0x30] sm:$0xff]
    %v843 = vld [vmem:[#allocation7 + $0x38] sm:$0xff]
    %v844 = vld [vmem:[#allocation7 + $0x40] sm:$0xff]
    %v845 = vld [vmem:[#allocation7 + $0x48] sm:$0xff]
    %v846 = vld [vmem:[#allocation7 + $0x50] sm:$0xff]
    %v847 = vld [vmem:[#allocation7 + $0x58] sm:$0xff]
    %v848 = vld [vmem:[#allocation7 + $0x60] sm:$0xff]
    %v849 = vld [vmem:[#allocation7 + $0x68] sm:$0xff]
    %v850 = vld [vmem:[#allocation7 + $0x70] sm:$0xff]
    %v851 = vld [vmem:[#allocation7 + $0x78] sm:$0xff]
    %853 = vset.pattern.permute.xlu0 0
    %854 = vperm.xlu0 %853, %v836
    %v855 = vpop.permute.xlu0 %854
    %858 = vset.pattern.permute.xlu0 0
    %859 = vperm.xlu0 %858, %v837
    %v860 = vpop.permute.xlu0 %859
    %863 = vset.pattern.permute.xlu0 0
    %864 = vperm.xlu0 %863, %v838
    %v865 = vpop.permute.xlu0 %864
    %868 = vset.pattern.permute.xlu0 0
    %869 = vperm.xlu0 %868, %v839
    %v870 = vpop.permute.xlu0 %869
    %873 = vset.pattern.permute.xlu0 0
    %874 = vperm.xlu0 %873, %v840
    %v875 = vpop.permute.xlu0 %874
    %878 = vset.pattern.permute.xlu0 0
    %879 = vperm.xlu0 %878, %v841
    %v880 = vpop.permute.xlu0 %879
    %883 = vset.pattern.permute.xlu0 0
    %884 = vperm.xlu0 %883, %v842
    %v885 = vpop.permute.xlu0 %884
    %888 = vset.pattern.permute.xlu0 0
    %889 = vperm.xlu0 %888, %v843
    %v890 = vpop.permute.xlu0 %889
    %893 = vset.pattern.permute.xlu0 0
    %894 = vperm.xlu0 %893, %v844
    %v895 = vpop.permute.xlu0 %894
    %898 = vset.pattern.permute.xlu0 0
    %899 = vperm.xlu0 %898, %v845
    %v900 = vpop.permute.xlu0 %899
    %903 = vset.pattern.permute.xlu0 0
    %904 = vperm.xlu0 %903, %v846
    %v905 = vpop.permute.xlu0 %904
    %908 = vset.pattern.permute.xlu0 0
    %909 = vperm.xlu0 %908, %v847
    %v910 = vpop.permute.xlu0 %909
    %913 = vset.pattern.permute.xlu0 0
    %914 = vperm.xlu0 %913, %v848
    %v915 = vpop.permute.xlu0 %914
    %918 = vset.pattern.permute.xlu0 0
    %919 = vperm.xlu0 %918, %v849
    %v920 = vpop.permute.xlu0 %919
    %923 = vset.pattern.permute.xlu0 0
    %924 = vperm.xlu0 %923, %v850
    %v925 = vpop.permute.xlu0 %924
    %928 = vset.pattern.permute.xlu0 0
    %929 = vperm.xlu0 %928, %v851
    %v930 = vpop.permute.xlu0 %929
    %v932 = vmul.f32 %v772, %v855
    %v933 = vmul.f32 %v773, %v855
    %v934 = vmul.f32 %v774, %v855
    %v935 = vmul.f32 %v775, %v855
    %v936 = vmul.f32 %v776, %v860
    %v937 = vmul.f32 %v777, %v860
    %v938 = vmul.f32 %v778, %v860
    %v939 = vmul.f32 %v779, %v860
    %v940 = vmul.f32 %v780, %v865
    %v941 = vmul.f32 %v781, %v865
    %v942 = vmul.f32 %v782, %v865
    %v943 = vmul.f32 %v783, %v865
    %v944 = vmul.f32 %v784, %v870
    %v945 = vmul.f32 %v785, %v870
    %v946 = vmul.f32 %v786, %v870
    %v947 = vmul.f32 %v787, %v870
    %v948 = vmul.f32 %v788, %v875
    %v949 = vmul.f32 %v789, %v875
    %v950 = vmul.f32 %v790, %v875
    %v951 = vmul.f32 %v791, %v875
    %v952 = vmul.f32 %v792, %v880
    %v953 = vmul.f32 %v793, %v880
    %v954 = vmul.f32 %v794, %v880
    %v955 = vmul.f32 %v795, %v880
    %v956 = vmul.f32 %v796, %v885
    %v957 = vmul.f32 %v797, %v885
    %v958 = vmul.f32 %v798, %v885
    %v959 = vmul.f32 %v799, %v885
    %v960 = vmul.f32 %v800, %v890
    %v961 = vmul.f32 %v801, %v890
    %v962 = vmul.f32 %v802, %v890
    %v963 = vmul.f32 %v803, %v890
    %v964 = vmul.f32 %v804, %v895
    %v965 = vmul.f32 %v805, %v895
    %v966 = vmul.f32 %v806, %v895
    %v967 = vmul.f32 %v807, %v895
    %v968 = vmul.f32 %v808, %v900
    %v969 = vmul.f32 %v809, %v900
    %v970 = vmul.f32 %v810, %v900
    %v971 = vmul.f32 %v811, %v900
    %v972 = vmul.f32 %v812, %v905
    %v973 = vmul.f32 %v813, %v905
    %v974 = vmul.f32 %v814, %v905
    %v975 = vmul.f32 %v815, %v905
    %v976 = vmul.f32 %v816, %v910
    %v977 = vmul.f32 %v817, %v910
    %v978 = vmul.f32 %v818, %v910
    %v979 = vmul.f32 %v819, %v910
    %v980 = vmul.f32 %v820, %v915
    %v981 = vmul.f32 %v821, %v915
    %v982 = vmul.f32 %v822, %v915
    %v983 = vmul.f32 %v823, %v915
    %v984 = vmul.f32 %v824, %v920
    %v985 = vmul.f32 %v825, %v920
    %v986 = vmul.f32 %v826, %v920
    %v987 = vmul.f32 %v827, %v920
    %v988 = vmul.f32 %v828, %v925
    %v989 = vmul.f32 %v829, %v925
    %v990 = vmul.f32 %v830, %v925
    %v991 = vmul.f32 %v831, %v925
    %v992 = vmul.f32 %v832, %v930
    %v993 = vmul.f32 %v833, %v930
    %v994 = vmul.f32 %v834, %v930
    %v995 = vmul.f32 %v835, %v930
    %v996 = vadd.f32 %v932, %v936
    %v997 = vadd.f32 %v996, %v940
    %v998 = vadd.f32 %v997, %v944
    %v999 = vadd.f32 %v998, %v948
    %v1000 = vadd.f32 %v999, %v952
    %v1001 = vadd.f32 %v1000, %v956
    %v1002 = vadd.f32 %v1001, %v960
    %v1003 = vadd.f32 %v1002, %v964
    %v1004 = vadd.f32 %v1003, %v968
    %v1005 = vadd.f32 %v1004, %v972
    %v1006 = vadd.f32 %v1005, %v976
    %v1007 = vadd.f32 %v1006, %v980
    %v1008 = vadd.f32 %v1007, %v984
    %v1009 = vadd.f32 %v1008, %v988
    %v1010 = vadd.f32 %v1009, %v992
    %v1011 = vrot.slane %v1010, 4
    %v1012 = vadd.f32 %v1010, %v1011
    %v1013 = vrot.slane %v1012, 2
    %v1014 = vadd.f32 %v1012, %v1013
    %v1015 = vrot.slane %v1014, 1
    %v1016 = vadd.f32 %v1014, %v1015
    %v1017 = vadd.f32 %v933, %v937
    %v1018 = vadd.f32 %v1017, %v941
    %v1019 = vadd.f32 %v1018, %v945
    %v1020 = vadd.f32 %v1019, %v949
    %v1021 = vadd.f32 %v1020, %v953
    %v1022 = vadd.f32 %v1021, %v957
    %v1023 = vadd.f32 %v1022, %v961
    %v1024 = vadd.f32 %v1023, %v965
    %v1025 = vadd.f32 %v1024, %v969
    %v1026 = vadd.f32 %v1025, %v973
    %v1027 = vadd.f32 %v1026, %v977
    %v1028 = vadd.f32 %v1027, %v981
    %v1029 = vadd.f32 %v1028, %v985
    %v1030 = vadd.f32 %v1029, %v989
    %v1031 = vadd.f32 %v1030, %v993
    %v1032 = vrot.slane %v1031, 4
    %v1033 = vadd.f32 %v1031, %v1032
    %v1034 = vrot.slane %v1033, 2
    %v1035 = vadd.f32 %v1033, %v1034
    %v1036 = vrot.slane %v1035, 1
    %v1037 = vadd.f32 %v1035, %v1036
    %v1038 = vadd.f32 %v934, %v938
    %v1039 = vadd.f32 %v1038, %v942
    %v1040 = vadd.f32 %v1039, %v946
    %v1041 = vadd.f32 %v1040, %v950
    %v1042 = vadd.f32 %v1041, %v954
    %v1043 = vadd.f32 %v1042, %v958
    %v1044 = vadd.f32 %v1043, %v962
    %v1045 = vadd.f32 %v1044, %v966
    %v1046 = vadd.f32 %v1045, %v970
    %v1047 = vadd.f32 %v1046, %v974
    %v1048 = vadd.f32 %v1047, %v978
    %v1049 = vadd.f32 %v1048, %v982
    %v1050 = vadd.f32 %v1049, %v986
    %v1051 = vadd.f32 %v1050, %v990
    %v1052 = vadd.f32 %v1051, %v994
    %v1053 = vrot.slane %v1052, 4
    %v1054 = vadd.f32 %v1052, %v1053
    %v1055 = vrot.slane %v1054, 2
    %v1056 = vadd.f32 %v1054, %v1055
    %v1057 = vrot.slane %v1056, 1
    %v1058 = vadd.f32 %v1056, %v1057
    %v1059 = vadd.f32 %v935, %v939
    %v1060 = vadd.f32 %v1059, %v943
    %v1061 = vadd.f32 %v1060, %v947
    %v1062 = vadd.f32 %v1061, %v951
    %v1063 = vadd.f32 %v1062, %v955
    %v1064 = vadd.f32 %v1063, %v959
    %v1065 = vadd.f32 %v1064, %v963
    %v1066 = vadd.f32 %v1065, %v967
    %v1067 = vadd.f32 %v1066, %v971
    %v1068 = vadd.f32 %v1067, %v975
    %v1069 = vadd.f32 %v1068, %v979
    %v1070 = vadd.f32 %v1069, %v983
    %v1071 = vadd.f32 %v1070, %v987
    %v1072 = vadd.f32 %v1071, %v991
    %v1073 = vadd.f32 %v1072, %v995
    %v1074 = vrot.slane %v1073, 4
    %v1075 = vadd.f32 %v1073, %v1074
    %v1076 = vrot.slane %v1075, 2
    %v1077 = vadd.f32 %v1075, %v1076
    %v1078 = vrot.slane %v1077, 1
    %v1079 = vadd.f32 %v1077, %v1078
    %v1080 = vld [vmem:[#allocation2] sm:$0x1]
    %1082 = vset.pattern.permute.xlu0 0
    %1083 = vperm.xlu0 %1082, %v1080
    %v1084 = vpop.permute.xlu0 %1083
    %v1086 = vperm.slane %v1084, 0
    %v1087 = vadd.f32 %v1016, %v1086
    %v1088 = vadd.f32 %v1037, %v1086
    %v1089 = vadd.f32 %v1058, %v1086
    %v1090 = vadd.f32 %v1079, %v1086
    %v1095 = vrot.slane %v1088, 7
    %v1096 = vrot.slane %v1089, 6
    %v1097 = vrot.slane %v1090, 5
    %vm1098 = vcmask 1040384
    %v1099 = vsel %vm1098, %v1087, %v1095
    %vm1100 = vcmask 1042434
    %v1101 = vsel %vm1100, %v1096, %v1097
    %vm1102 = vcmask 1041408
    %v1103 = vsel %vm1102, %v1099, %v1101
    %v1105 = vlaneseq
    %vm1106 = vcmp.ge.s32.totalorder %v1105, 0
    %vm1107 = vcmp.lt.s32.totalorder %v1105, 512
    %vm1108 = vmand %vm1106, %vm1107
    %1109 = vst.msk [vmem:[%s6] sm:$0xf] %vm1108, %v1103
    // Predicated region
    $region38: #{tree_gan_discriminator.1} parent=1 // pred_check
      _
    $region39: #{tree_gan_discriminator.1} parent=1 // pred_check_branch
      %1111 = sbr.rel (0) target = $region41
    $region40: #{tree_gan_discriminator.1} parent=1 // pred_region
      _
    $region41: #{tree_gan_discriminator.1} parent=1 // pred_fallthru
      _
    // Predicated region
    $region42: #{tree_gan_discriminator.1} parent=1 // pred_check
      _
    $region43: #{tree_gan_discriminator.1} parent=1 // pred_check_branch
      %1113 = sbr.rel (0) target = $region45
    $region44: #{tree_gan_discriminator.1} parent=1 // pred_region
      _
    $region45: #{tree_gan_discriminator.1} parent=1 // pred_fallthru
      _
    %1114 = vsyncpa [#allocation4], 1
    %1115 = vsyncpa [#allocation6], 1

</llo_original>
